<compile_context>
chip_gen: v5e
topology: v5e:2x2
jax: 0.10.0
libtpu: 0.0.40
codegen_flags: <defaults>
</compile_context>

<pallas_src>
import functools

import jax
import jax.numpy as jnp
from jax import lax
from jax.experimental import pallas as pl
from jax.experimental.pallas import tpu as pltpu

NEG_SLOPE = 0.2                  # LeakyReLU slope used throughout ResStack
DILATIONS = (1, 3, 9, 27)        # 3**i for i in range(4)


def _leaky(v):
    return jnp.where(v >= 0, v, NEG_SLOPE * v)


def _reverse_last(v):
    """Reverse the last axis of v (length d) via an anti-identity matmul.

    d <= 27, so this is a tiny MXU op; avoids relying on lax.rev lowering on the
    lane axis.
    """
    d = v.shape[-1]
    if d == 1:
        return v
    r = lax.broadcasted_iota(jnp.int32, (d, d), 0)
    c = lax.broadcasted_iota(jnp.int32, (d, d), 1)
    anti_eye = (r + c == d - 1).astype(v.dtype)
    return jnp.dot(v, anti_eye, preferred_element_type=jnp.float32)


# ------------------------- fused Pallas kernel (all 4 blocks) ----------------
def _res_stack_kernel(x_ref, wfg_ref, bfg_ref, wout_ref, bout_ref, o_ref):
    """One batch element, NCL layout (channels on sublanes, time on lanes).

    x_ref   : (C, T)        activations (C = padded channel count)
    wfg_ref : (4, 2C, 3C)   fused [conv_f; conv_g] weights, columns tap-major (k*C + c)
    bfg_ref : (4, 2C, 1)    fused [bf; bg]
    wout_ref: (4, C, 2C)    fused [shortcut | conv1x1] weights, columns = [x | h]
    bout_ref: (4, C, 1)     bs + b1
    """
    C, T = x_ref.shape
    x = x_ref[...].astype(jnp.float32)

    for i, d in enumerate(DILATIONS):          # unrolled: d is a Python constant
        a = _leaky(x)                          # pre-conv LeakyReLU(0.2)

        # Reflection-padded dilated taps: y_k[t] = a_pad[t + k*d], k = 0, 1, 2.
        left = _reverse_last(a[:, 1:d + 1])              # a[:, d:0:-1]
        right = _reverse_last(a[:, T - 1 - d:T - 1])     # a[:, T-2:T-2-d:-1]
        a0 = jnp.concatenate([left, a[:, :T - d]], axis=1)   # k = 0 tap
        a2 = jnp.concatenate([a[:, d:], right], axis=1)      # k = 2 tap
        taps = jnp.concatenate([a0, a, a2], axis=0)          # (3C, T), K = 3C

        # conv_f and conv_g fused into a single MXU matmul (2C outputs).
        fg = jnp.dot(wfg_ref[i], taps,
                     preferred_element_type=jnp.float32) + bfg_ref[i]
        h = _leaky(jnp.tanh(fg[:C]) * jax.nn.sigmoid(fg[C:]))   # gated + LeakyReLU

        # shortcut 1x1 and block 1x1 fused into one matmul over [x ; h].
        xh = jnp.concatenate([x, h], axis=0)                   # (2C, T)
        x = jnp.dot(wout_ref[i], xh,
                    preferred_element_type=jnp.float32) + bout_ref[i]

    o_ref[...] = x.astype(o_ref.dtype)


# ------------------------- wrapper -------------------------------------------
def res_stack_forward(x_ncl, packed):
    """Matches PyTorch ResStack.forward. Input/output: (B, C, T) (NCL)."""
    B, C, T = x_ncl.shape
    if T <= DILATIONS[-1]:
        raise ValueError(f"reflection pad needs T > {DILATIONS[-1]}, got T={T}")

    wfg, bfg, wout, bout = (packed[k] for k in ("wfg", "bfg", "wout", "bout"))
    Cp = wout.shape[1]                                  # padded channel count
    xp = x_ncl if Cp == C else jnp.pad(x_ncl, ((0, 0), (0, Cp - C), (0, 0)))

    act_spec = pl.BlockSpec((None, Cp, T), lambda b: (b, 0, 0))
    # Weights/biases: full-array blocks with constant index maps -> DMA'd once,
    # stay resident in VMEM across the whole batch grid.
    def const_spec(a):
        return pl.BlockSpec(a.shape, lambda b, _n=a.ndim: (0,) * _n)

    out = pl.pallas_call(
        _res_stack_kernel,
        out_shape=jax.ShapeDtypeStruct((B, Cp, T), x_ncl.dtype),
        grid=(B,),
        in_specs=[act_spec, const_spec(wfg), const_spec(bfg),
                  const_spec(wout), const_spec(bout)],
        out_specs=act_spec,
        compiler_params=pltpu.CompilerParams(
            dimension_semantics=("parallel",),          # megacore sharding on v7x
            vmem_limit_bytes=48 * 1024 * 1024),         # safe on v7x's 64 MiB VMEM
    )(xp, wfg, bfg, wout, bout)

    return out if Cp == C else out[:, :C, :]


# ------------------------- parameters ----------------------------------------
def init_params(key, channel):
    """Canonical per-block params in PyTorch layouts:
       wf/wg: (O, I, 3), bf/bg: (O,), w1/ws: (O, I), b1/bs: (O,)."""
    params = []
    for i in range(4):
        ks = jax.random.split(jax.random.fold_in(key, i), 8)
        s3 = 1.0 / (channel * 3) ** 0.5
        s1 = 1.0 / channel ** 0.5
        u = functools.partial(jax.random.uniform, dtype=jnp.float32)
        params.append(dict(
            wf=u(ks[0], (channel, channel, 3), minval=-s3, maxval=s3),
            bf=u(ks[1], (channel,), minval=-s3, maxval=s3),
            wg=u(ks[2], (channel, channel, 3), minval=-s3, maxval=s3),
            bg=u(ks[3], (channel,), minval=-s3, maxval=s3),
            w1=u(ks[4], (channel, channel), minval=-s1, maxval=s1),
            b1=u(ks[5], (channel,), minval=-s1, maxval=s1),
            ws=u(ks[6], (channel, channel), minval=-s1, maxval=s1),
            bs=u(ks[7], (channel,), minval=-s1, maxval=s1),
        ))
    return params


def pack_params(params, sublane=8):
    """Zero-pad channels to a multiple of `sublane` and fold the per-block weights
    into the fused layouts consumed by the kernel (pure layout work, done once)."""
    C = params[0]["w1"].shape[0]
    Cp = max(sublane, ((C + sublane - 1) // sublane) * sublane)
    pc = Cp - C
    wfg, bfg, wout, bout = [], [], [], []
    for p in params:
        wf = jnp.pad(p["wf"], ((0, pc), (0, pc), (0, 0)))
        wg = jnp.pad(p["wg"], ((0, pc), (0, pc), (0, 0)))
        bf = jnp.pad(p["bf"], (0, pc))
        bg = jnp.pad(p["bg"], (0, pc))
        w1 = jnp.pad(p["w1"], ((0, pc), (0, pc)))
        ws = jnp.pad(p["ws"], ((0, pc), (0, pc)))
        b1 = jnp.pad(p["b1"], (0, pc))
        bs = jnp.pad(p["bs"], (0, pc))
        # column index = k*Cp + c  (matches taps = [a0; a1; a2] row stacking)
        wf2 = jnp.transpose(wf, (0, 2, 1)).reshape(Cp, 3 * Cp)
        wg2 = jnp.transpose(wg, (0, 2, 1)).reshape(Cp, 3 * Cp)
        wfg.append(jnp.concatenate([wf2, wg2], axis=0))          # (2Cp, 3Cp)
        bfg.append(jnp.concatenate([bf, bg]).reshape(2 * Cp, 1))
        wout.append(jnp.concatenate([ws, w1], axis=1))           # (Cp, 2Cp): [x | h]
        bout.append((bs + b1).reshape(Cp, 1))
    return dict(wfg=jnp.stack(wfg), bfg=jnp.stack(bfg),
                wout=jnp.stack(wout), bout=jnp.stack(bout))


# ------------------------- pure-JAX reference (verification) -----------------
def ref_forward(x_ncl, params):
    x = x_ncl
    for i, p in enumerate(params):
        d = 3 ** i
        a = _leaky(x)
        a_pad = jnp.pad(a, ((0, 0), (0, 0), (d, d)), mode="reflect")
        conv = functools.partial(
            lax.conv_general_dilated, window_strides=(1,), padding="VALID",
            rhs_dilation=(d,), dimension_numbers=("NCH", "OIH", "NCH"))
        f = conv(a_pad, p["wf"]) + p["bf"].reshape(1, -1, 1)
        g = conv(a_pad, p["wg"]) + p["bg"].reshape(1, -1, 1)
        h = _leaky(jnp.tanh(f) * jax.nn.sigmoid(g))
        blk = jnp.einsum("oc,bct->bot", p["w1"], h) + p["b1"].reshape(1, -1, 1)
        sc = jnp.einsum("oc,bct->bot", p["ws"], x) + p["bs"].reshape(1, -1, 1)
        x = sc + blk
    return x


# ------------------------- main ----------------------------------------------
if __name__ == "__main__":
    key = jax.random.PRNGKey(0)
    B, C, T = 2, 4, 32   # T must exceed the largest reflection pad (3**3 = 27)
    kx, kp = jax.random.split(key)
    x = jax.random.normal(kx, (B, C, T), dtype=jnp.float32)   # PyTorch NCL input
    params = init_params(kp, C)
    packed = pack_params(params)

    out = jax.block_until_ready(res_stack_forward(x, packed))
    ref = jax.block_until_ready(ref_forward(x, params))

    assert out.shape == (B, C, T)
    err = jnp.max(jnp.abs(out - ref))
    assert jnp.allclose(out, ref, atol=1e-4, rtol=1e-4), f"max abs err {err}"

    print("KERNEL_OK")
</pallas_src>

<mosaic_0001>
module attributes {stable_mosaic.version = 11 : i64} {
  func.func @_res_stack_kernel(%arg0: i32, %arg1: memref<1x8x32xf32, #tpu.memory_space<vmem>>, %arg2: memref<4x16x24xf32, #tpu.memory_space<vmem>>, %arg3: memref<4x16x1xf32, #tpu.memory_space<vmem>>, %arg4: memref<4x8x16xf32, #tpu.memory_space<vmem>>, %arg5: memref<4x8x1xf32, #tpu.memory_space<vmem>>, %arg6: memref<1x8x32xf32, #tpu.memory_space<vmem>>) attributes {dimension_semantics = [#tpu.dimension_semantics<parallel>], iteration_bounds = array<i64: 2>, scalar_prefetch = 0 : i64, scratch_operands = 0 : i64, tpu.core_type = #tpu.core_type<tc>, window_params = [{transform_indices = @transform_0, window_bounds = array<i64: 1, 8, 32>}, {pipeline_mode = #tpu.pipeline_mode<synchronous>, transform_indices = @transform_1, window_bounds = array<i64: 4, 16, 24>}, {pipeline_mode = #tpu.pipeline_mode<synchronous>, transform_indices = @transform_2, window_bounds = array<i64: 4, 16, 1>}, {pipeline_mode = #tpu.pipeline_mode<synchronous>, transform_indices = @transform_3, window_bounds = array<i64: 4, 8, 16>}, {pipeline_mode = #tpu.pipeline_mode<synchronous>, transform_indices = @transform_4, window_bounds = array<i64: 4, 8, 1>}, {transform_indices = @transform_5, window_bounds = array<i64: 1, 8, 32>}]} {
    %c0 = arith.constant 0 : index
    %c0_0 = arith.constant 0 : index
    %c0_1 = arith.constant 0 : index
    %0 = vector.load %arg1[%c0, %c0_0, %c0_1] : memref<1x8x32xf32, #tpu.memory_space<vmem>>, vector<1x8x32xf32>
    %1 = vector.shape_cast %0 : vector<1x8x32xf32> to vector<8x32xf32>
    %cst = arith.constant 0.000000e+00 : f32
    %2 = vector.broadcast %cst : f32 to vector<8x32xf32>
    %3 = arith.cmpf oge, %1, %2 : vector<8x32xf32>
    %cst_2 = arith.constant 2.000000e-01 : f32
    %4 = vector.broadcast %cst_2 : f32 to vector<8x32xf32>
    %5 = arith.mulf %4, %1 : vector<8x32xf32>
    %6 = arith.select %3, %1, %5 : vector<8x32xi1>, vector<8x32xf32>
    %7 = vector.extract_strided_slice %6 {offsets = [0, 1], sizes = [8, 1], strides = [1, 1]} : vector<8x32xf32> to vector<8x1xf32>
    %8 = vector.extract_strided_slice %6 {offsets = [0, 30], sizes = [8, 1], strides = [1, 1]} : vector<8x32xf32> to vector<8x1xf32>
    %9 = vector.extract_strided_slice %6 {offsets = [0, 0], sizes = [8, 31], strides = [1, 1]} : vector<8x32xf32> to vector<8x31xf32>
    %10 = tpu.concatenate %7, %9 in 1 : vector<8x1xf32>, vector<8x31xf32> -> vector<8x32xf32>
    %11 = vector.extract_strided_slice %6 {offsets = [0, 1], sizes = [8, 31], strides = [1, 1]} : vector<8x32xf32> to vector<8x31xf32>
    %12 = tpu.concatenate %11, %8 in 1 : vector<8x31xf32>, vector<8x1xf32> -> vector<8x32xf32>
    %13 = tpu.concatenate %10, %6, %12 in 0 : vector<8x32xf32>, vector<8x32xf32>, vector<8x32xf32> -> vector<24x32xf32>
    %c0_3 = arith.constant 0 : index
    %c0_4 = arith.constant 0 : index
    %c0_5 = arith.constant 0 : index
    %14 = vector.load %arg2[%c0_3, %c0_4, %c0_5] : memref<4x16x24xf32, #tpu.memory_space<vmem>>, vector<1x16x24xf32>
    %15 = vector.shape_cast %14 : vector<1x16x24xf32> to vector<16x24xf32>
    %cst_6 = arith.constant dense<0.000000e+00> : vector<16x32xf32>
    %16 = tpu.matmul %15, %13, %cst_6 {dimension_numbers = #tpu.dot_dimension_numbers<[1], [0], [0], [1], [0, 0, 1, 1], [], []>} : vector<16x24xf32>, vector<24x32xf32>, vector<16x32xf32> -> vector<16x32xf32>
    %c0_7 = arith.constant 0 : index
    %c0_8 = arith.constant 0 : index
    %c0_9 = arith.constant 0 : index
    %17 = vector.load %arg3[%c0_7, %c0_8, %c0_9] : memref<4x16x1xf32, #tpu.memory_space<vmem>>, vector<1x16x1xf32>
    %18 = vector.shape_cast %17 : vector<1x16x1xf32> to vector<16x1xf32>
    %19 = vector.broadcast %18 : vector<16x1xf32> to vector<16x32xf32>
    %20 = arith.addf %16, %19 : vector<16x32xf32>
    %21 = vector.extract_strided_slice %20 {offsets = [0, 0], sizes = [8, 32], strides = [1, 1]} : vector<16x32xf32> to vector<8x32xf32>
    %22 = math.tanh %21 : vector<8x32xf32>
    %23 = vector.extract_strided_slice %20 {offsets = [8, 0], sizes = [8, 32], strides = [1, 1]} : vector<16x32xf32> to vector<8x32xf32>
    %24 = arith.negf %23 : vector<8x32xf32>
    %25 = math.exp %24 : vector<8x32xf32>
    %cst_10 = arith.constant 1.000000e+00 : f32
    %26 = vector.broadcast %cst_10 : f32 to vector<8x32xf32>
    %27 = arith.addf %26, %25 : vector<8x32xf32>
    %28 = arith.divf %26, %27 : vector<8x32xf32>
    %29 = arith.mulf %22, %28 : vector<8x32xf32>
    %cst_11 = arith.constant 0.000000e+00 : f32
    %30 = vector.broadcast %cst_11 : f32 to vector<8x32xf32>
    %31 = arith.cmpf oge, %29, %30 : vector<8x32xf32>
    %cst_12 = arith.constant 2.000000e-01 : f32
    %32 = vector.broadcast %cst_12 : f32 to vector<8x32xf32>
    %33 = arith.mulf %32, %29 : vector<8x32xf32>
    %34 = arith.select %31, %29, %33 : vector<8x32xi1>, vector<8x32xf32>
    %35 = tpu.concatenate %1, %34 in 0 : vector<8x32xf32>, vector<8x32xf32> -> vector<16x32xf32>
    %c0_13 = arith.constant 0 : index
    %c0_14 = arith.constant 0 : index
    %c0_15 = arith.constant 0 : index
    %36 = vector.load %arg4[%c0_13, %c0_14, %c0_15] : memref<4x8x16xf32, #tpu.memory_space<vmem>>, vector<1x8x16xf32>
    %37 = vector.shape_cast %36 : vector<1x8x16xf32> to vector<8x16xf32>
    %cst_16 = arith.constant dense<0.000000e+00> : vector<8x32xf32>
    %38 = tpu.matmul %37, %35, %cst_16 {dimension_numbers = #tpu.dot_dimension_numbers<[1], [0], [0], [1], [0, 0, 1, 1], [], []>} : vector<8x16xf32>, vector<16x32xf32>, vector<8x32xf32> -> vector<8x32xf32>
    %c0_17 = arith.constant 0 : index
    %c0_18 = arith.constant 0 : index
    %c0_19 = arith.constant 0 : index
    %39 = vector.load %arg5[%c0_17, %c0_18, %c0_19] : memref<4x8x1xf32, #tpu.memory_space<vmem>>, vector<1x8x1xf32>
    %40 = vector.shape_cast %39 : vector<1x8x1xf32> to vector<8x1xf32>
    %41 = vector.broadcast %40 : vector<8x1xf32> to vector<8x32xf32>
    %42 = arith.addf %38, %41 : vector<8x32xf32>
    %cst_20 = arith.constant 0.000000e+00 : f32
    %43 = vector.broadcast %cst_20 : f32 to vector<8x32xf32>
    %44 = arith.cmpf oge, %42, %43 : vector<8x32xf32>
    %cst_21 = arith.constant 2.000000e-01 : f32
    %45 = vector.broadcast %cst_21 : f32 to vector<8x32xf32>
    %46 = arith.mulf %45, %42 : vector<8x32xf32>
    %47 = arith.select %44, %42, %46 : vector<8x32xi1>, vector<8x32xf32>
    %48 = vector.extract_strided_slice %47 {offsets = [0, 1], sizes = [8, 3], strides = [1, 1]} : vector<8x32xf32> to vector<8x3xf32>
    %49 = tpu.iota {dimensions = array<i32: 0>} : vector<3x3xi32>
    %50 = tpu.iota {dimensions = array<i32: 1>} : vector<3x3xi32>
    %51 = arith.addi %49, %50 : vector<3x3xi32>
    %c2_i32 = arith.constant 2 : i32
    %52 = vector.broadcast %c2_i32 : i32 to vector<3x3xi32>
    %53 = arith.cmpi eq, %51, %52 : vector<3x3xi32>
    %54 = arith.extui %53 : vector<3x3xi1> to vector<3x3xi32>
    %55 = arith.sitofp %54 : vector<3x3xi32> to vector<3x3xf32>
    %cst_22 = arith.constant dense<0.000000e+00> : vector<8x3xf32>
    %56 = tpu.matmul %48, %55, %cst_22 {dimension_numbers = #tpu.dot_dimension_numbers<[1], [0], [0], [1], [0, 0, 1, 1], [], []>} : vector<8x3xf32>, vector<3x3xf32>, vector<8x3xf32> -> vector<8x3xf32>
    %57 = vector.extract_strided_slice %47 {offsets = [0, 28], sizes = [8, 3], strides = [1, 1]} : vector<8x32xf32> to vector<8x3xf32>
    %58 = tpu.iota {dimensions = array<i32: 0>} : vector<3x3xi32>
    %59 = tpu.iota {dimensions = array<i32: 1>} : vector<3x3xi32>
    %60 = arith.addi %58, %59 : vector<3x3xi32>
    %c2_i32_23 = arith.constant 2 : i32
    %61 = vector.broadcast %c2_i32_23 : i32 to vector<3x3xi32>
    %62 = arith.cmpi eq, %60, %61 : vector<3x3xi32>
    %63 = arith.extui %62 : vector<3x3xi1> to vector<3x3xi32>
    %64 = arith.sitofp %63 : vector<3x3xi32> to vector<3x3xf32>
    %cst_24 = arith.constant dense<0.000000e+00> : vector<8x3xf32>
    %65 = tpu.matmul %57, %64, %cst_24 {dimension_numbers = #tpu.dot_dimension_numbers<[1], [0], [0], [1], [0, 0, 1, 1], [], []>} : vector<8x3xf32>, vector<3x3xf32>, vector<8x3xf32> -> vector<8x3xf32>
    %66 = vector.extract_strided_slice %47 {offsets = [0, 0], sizes = [8, 29], strides = [1, 1]} : vector<8x32xf32> to vector<8x29xf32>
    %67 = tpu.concatenate %56, %66 in 1 : vector<8x3xf32>, vector<8x29xf32> -> vector<8x32xf32>
    %68 = vector.extract_strided_slice %47 {offsets = [0, 3], sizes = [8, 29], strides = [1, 1]} : vector<8x32xf32> to vector<8x29xf32>
    %69 = tpu.concatenate %68, %65 in 1 : vector<8x29xf32>, vector<8x3xf32> -> vector<8x32xf32>
    %70 = tpu.concatenate %67, %47, %69 in 0 : vector<8x32xf32>, vector<8x32xf32>, vector<8x32xf32> -> vector<24x32xf32>
    %c1 = arith.constant 1 : index
    %c0_25 = arith.constant 0 : index
    %c0_26 = arith.constant 0 : index
    %71 = vector.load %arg2[%c1, %c0_25, %c0_26] : memref<4x16x24xf32, #tpu.memory_space<vmem>>, vector<1x16x24xf32>
    %72 = vector.shape_cast %71 : vector<1x16x24xf32> to vector<16x24xf32>
    %cst_27 = arith.constant dense<0.000000e+00> : vector<16x32xf32>
    %73 = tpu.matmul %72, %70, %cst_27 {dimension_numbers = #tpu.dot_dimension_numbers<[1], [0], [0], [1], [0, 0, 1, 1], [], []>} : vector<16x24xf32>, vector<24x32xf32>, vector<16x32xf32> -> vector<16x32xf32>
    %c1_28 = arith.constant 1 : index
    %c0_29 = arith.constant 0 : index
    %c0_30 = arith.constant 0 : index
    %74 = vector.load %arg3[%c1_28, %c0_29, %c0_30] : memref<4x16x1xf32, #tpu.memory_space<vmem>>, vector<1x16x1xf32>
    %75 = vector.shape_cast %74 : vector<1x16x1xf32> to vector<16x1xf32>
    %76 = vector.broadcast %75 : vector<16x1xf32> to vector<16x32xf32>
    %77 = arith.addf %73, %76 : vector<16x32xf32>
    %78 = vector.extract_strided_slice %77 {offsets = [0, 0], sizes = [8, 32], strides = [1, 1]} : vector<16x32xf32> to vector<8x32xf32>
    %79 = math.tanh %78 : vector<8x32xf32>
    %80 = vector.extract_strided_slice %77 {offsets = [8, 0], sizes = [8, 32], strides = [1, 1]} : vector<16x32xf32> to vector<8x32xf32>
    %81 = arith.negf %80 : vector<8x32xf32>
    %82 = math.exp %81 : vector<8x32xf32>
    %cst_31 = arith.constant 1.000000e+00 : f32
    %83 = vector.broadcast %cst_31 : f32 to vector<8x32xf32>
    %84 = arith.addf %83, %82 : vector<8x32xf32>
    %85 = arith.divf %83, %84 : vector<8x32xf32>
    %86 = arith.mulf %79, %85 : vector<8x32xf32>
    %cst_32 = arith.constant 0.000000e+00 : f32
    %87 = vector.broadcast %cst_32 : f32 to vector<8x32xf32>
    %88 = arith.cmpf oge, %86, %87 : vector<8x32xf32>
    %cst_33 = arith.constant 2.000000e-01 : f32
    %89 = vector.broadcast %cst_33 : f32 to vector<8x32xf32>
    %90 = arith.mulf %89, %86 : vector<8x32xf32>
    %91 = arith.select %88, %86, %90 : vector<8x32xi1>, vector<8x32xf32>
    %92 = tpu.concatenate %42, %91 in 0 : vector<8x32xf32>, vector<8x32xf32> -> vector<16x32xf32>
    %c1_34 = arith.constant 1 : index
    %c0_35 = arith.constant 0 : index
    %c0_36 = arith.constant 0 : index
    %93 = vector.load %arg4[%c1_34, %c0_35, %c0_36] : memref<4x8x16xf32, #tpu.memory_space<vmem>>, vector<1x8x16xf32>
    %94 = vector.shape_cast %93 : vector<1x8x16xf32> to vector<8x16xf32>
    %cst_37 = arith.constant dense<0.000000e+00> : vector<8x32xf32>
    %95 = tpu.matmul %94, %92, %cst_37 {dimension_numbers = #tpu.dot_dimension_numbers<[1], [0], [0], [1], [0, 0, 1, 1], [], []>} : vector<8x16xf32>, vector<16x32xf32>, vector<8x32xf32> -> vector<8x32xf32>
    %c1_38 = arith.constant 1 : index
    %c0_39 = arith.constant 0 : index
    %c0_40 = arith.constant 0 : index
    %96 = vector.load %arg5[%c1_38, %c0_39, %c0_40] : memref<4x8x1xf32, #tpu.memory_space<vmem>>, vector<1x8x1xf32>
    %97 = vector.shape_cast %96 : vector<1x8x1xf32> to vector<8x1xf32>
    %98 = vector.broadcast %97 : vector<8x1xf32> to vector<8x32xf32>
    %99 = arith.addf %95, %98 : vector<8x32xf32>
    %cst_41 = arith.constant 0.000000e+00 : f32
    %100 = vector.broadcast %cst_41 : f32 to vector<8x32xf32>
    %101 = arith.cmpf oge, %99, %100 : vector<8x32xf32>
    %cst_42 = arith.constant 2.000000e-01 : f32
    %102 = vector.broadcast %cst_42 : f32 to vector<8x32xf32>
    %103 = arith.mulf %102, %99 : vector<8x32xf32>
    %104 = arith.select %101, %99, %103 : vector<8x32xi1>, vector<8x32xf32>
    %105 = vector.extract_strided_slice %104 {offsets = [0, 1], sizes = [8, 9], strides = [1, 1]} : vector<8x32xf32> to vector<8x9xf32>
    %106 = tpu.iota {dimensions = array<i32: 0>} : vector<9x9xi32>
    %107 = tpu.iota {dimensions = array<i32: 1>} : vector<9x9xi32>
    %108 = arith.addi %106, %107 : vector<9x9xi32>
    %c8_i32 = arith.constant 8 : i32
    %109 = vector.broadcast %c8_i32 : i32 to vector<9x9xi32>
    %110 = arith.cmpi eq, %108, %109 : vector<9x9xi32>
    %111 = arith.extui %110 : vector<9x9xi1> to vector<9x9xi32>
    %112 = arith.sitofp %111 : vector<9x9xi32> to vector<9x9xf32>
    %cst_43 = arith.constant dense<0.000000e+00> : vector<8x9xf32>
    %113 = tpu.matmul %105, %112, %cst_43 {dimension_numbers = #tpu.dot_dimension_numbers<[1], [0], [0], [1], [0, 0, 1, 1], [], []>} : vector<8x9xf32>, vector<9x9xf32>, vector<8x9xf32> -> vector<8x9xf32>
    %114 = vector.extract_strided_slice %104 {offsets = [0, 22], sizes = [8, 9], strides = [1, 1]} : vector<8x32xf32> to vector<8x9xf32>
    %115 = tpu.iota {dimensions = array<i32: 0>} : vector<9x9xi32>
    %116 = tpu.iota {dimensions = array<i32: 1>} : vector<9x9xi32>
    %117 = arith.addi %115, %116 : vector<9x9xi32>
    %c8_i32_44 = arith.constant 8 : i32
    %118 = vector.broadcast %c8_i32_44 : i32 to vector<9x9xi32>
    %119 = arith.cmpi eq, %117, %118 : vector<9x9xi32>
    %120 = arith.extui %119 : vector<9x9xi1> to vector<9x9xi32>
    %121 = arith.sitofp %120 : vector<9x9xi32> to vector<9x9xf32>
    %cst_45 = arith.constant dense<0.000000e+00> : vector<8x9xf32>
    %122 = tpu.matmul %114, %121, %cst_45 {dimension_numbers = #tpu.dot_dimension_numbers<[1], [0], [0], [1], [0, 0, 1, 1], [], []>} : vector<8x9xf32>, vector<9x9xf32>, vector<8x9xf32> -> vector<8x9xf32>
    %123 = vector.extract_strided_slice %104 {offsets = [0, 0], sizes = [8, 23], strides = [1, 1]} : vector<8x32xf32> to vector<8x23xf32>
    %124 = tpu.concatenate %113, %123 in 1 : vector<8x9xf32>, vector<8x23xf32> -> vector<8x32xf32>
    %125 = vector.extract_strided_slice %104 {offsets = [0, 9], sizes = [8, 23], strides = [1, 1]} : vector<8x32xf32> to vector<8x23xf32>
    %126 = tpu.concatenate %125, %122 in 1 : vector<8x23xf32>, vector<8x9xf32> -> vector<8x32xf32>
    %127 = tpu.concatenate %124, %104, %126 in 0 : vector<8x32xf32>, vector<8x32xf32>, vector<8x32xf32> -> vector<24x32xf32>
    %c2 = arith.constant 2 : index
    %c0_46 = arith.constant 0 : index
    %c0_47 = arith.constant 0 : index
    %128 = vector.load %arg2[%c2, %c0_46, %c0_47] : memref<4x16x24xf32, #tpu.memory_space<vmem>>, vector<1x16x24xf32>
    %129 = vector.shape_cast %128 : vector<1x16x24xf32> to vector<16x24xf32>
    %cst_48 = arith.constant dense<0.000000e+00> : vector<16x32xf32>
    %130 = tpu.matmul %129, %127, %cst_48 {dimension_numbers = #tpu.dot_dimension_numbers<[1], [0], [0], [1], [0, 0, 1, 1], [], []>} : vector<16x24xf32>, vector<24x32xf32>, vector<16x32xf32> -> vector<16x32xf32>
    %c2_49 = arith.constant 2 : index
    %c0_50 = arith.constant 0 : index
    %c0_51 = arith.constant 0 : index
    %131 = vector.load %arg3[%c2_49, %c0_50, %c0_51] : memref<4x16x1xf32, #tpu.memory_space<vmem>>, vector<1x16x1xf32>
    %132 = vector.shape_cast %131 : vector<1x16x1xf32> to vector<16x1xf32>
    %133 = vector.broadcast %132 : vector<16x1xf32> to vector<16x32xf32>
    %134 = arith.addf %130, %133 : vector<16x32xf32>
    %135 = vector.extract_strided_slice %134 {offsets = [0, 0], sizes = [8, 32], strides = [1, 1]} : vector<16x32xf32> to vector<8x32xf32>
    %136 = math.tanh %135 : vector<8x32xf32>
    %137 = vector.extract_strided_slice %134 {offsets = [8, 0], sizes = [8, 32], strides = [1, 1]} : vector<16x32xf32> to vector<8x32xf32>
    %138 = arith.negf %137 : vector<8x32xf32>
    %139 = math.exp %138 : vector<8x32xf32>
    %cst_52 = arith.constant 1.000000e+00 : f32
    %140 = vector.broadcast %cst_52 : f32 to vector<8x32xf32>
    %141 = arith.addf %140, %139 : vector<8x32xf32>
    %142 = arith.divf %140, %141 : vector<8x32xf32>
    %143 = arith.mulf %136, %142 : vector<8x32xf32>
    %cst_53 = arith.constant 0.000000e+00 : f32
    %144 = vector.broadcast %cst_53 : f32 to vector<8x32xf32>
    %145 = arith.cmpf oge, %143, %144 : vector<8x32xf32>
    %cst_54 = arith.constant 2.000000e-01 : f32
    %146 = vector.broadcast %cst_54 : f32 to vector<8x32xf32>
    %147 = arith.mulf %146, %143 : vector<8x32xf32>
    %148 = arith.select %145, %143, %147 : vector<8x32xi1>, vector<8x32xf32>
    %149 = tpu.concatenate %99, %148 in 0 : vector<8x32xf32>, vector<8x32xf32> -> vector<16x32xf32>
    %c2_55 = arith.constant 2 : index
    %c0_56 = arith.constant 0 : index
    %c0_57 = arith.constant 0 : index
    %150 = vector.load %arg4[%c2_55, %c0_56, %c0_57] : memref<4x8x16xf32, #tpu.memory_space<vmem>>, vector<1x8x16xf32>
    %151 = vector.shape_cast %150 : vector<1x8x16xf32> to vector<8x16xf32>
    %cst_58 = arith.constant dense<0.000000e+00> : vector<8x32xf32>
    %152 = tpu.matmul %151, %149, %cst_58 {dimension_numbers = #tpu.dot_dimension_numbers<[1], [0], [0], [1], [0, 0, 1, 1], [], []>} : vector<8x16xf32>, vector<16x32xf32>, vector<8x32xf32> -> vector<8x32xf32>
    %c2_59 = arith.constant 2 : index
    %c0_60 = arith.constant 0 : index
    %c0_61 = arith.constant 0 : index
    %153 = vector.load %arg5[%c2_59, %c0_60, %c0_61] : memref<4x8x1xf32, #tpu.memory_space<vmem>>, vector<1x8x1xf32>
    %154 = vector.shape_cast %153 : vector<1x8x1xf32> to vector<8x1xf32>
    %155 = vector.broadcast %154 : vector<8x1xf32> to vector<8x32xf32>
    %156 = arith.addf %152, %155 : vector<8x32xf32>
    %cst_62 = arith.constant 0.000000e+00 : f32
    %157 = vector.broadcast %cst_62 : f32 to vector<8x32xf32>
    %158 = arith.cmpf oge, %156, %157 : vector<8x32xf32>
    %cst_63 = arith.constant 2.000000e-01 : f32
    %159 = vector.broadcast %cst_63 : f32 to vector<8x32xf32>
    %160 = arith.mulf %159, %156 : vector<8x32xf32>
    %161 = arith.select %158, %156, %160 : vector<8x32xi1>, vector<8x32xf32>
    %162 = vector.extract_strided_slice %161 {offsets = [0, 1], sizes = [8, 27], strides = [1, 1]} : vector<8x32xf32> to vector<8x27xf32>
    %163 = tpu.iota {dimensions = array<i32: 0>} : vector<27x27xi32>
    %164 = tpu.iota {dimensions = array<i32: 1>} : vector<27x27xi32>
    %165 = arith.addi %163, %164 : vector<27x27xi32>
    %c26_i32 = arith.constant 26 : i32
    %166 = vector.broadcast %c26_i32 : i32 to vector<27x27xi32>
    %167 = arith.cmpi eq, %165, %166 : vector<27x27xi32>
    %168 = arith.extui %167 : vector<27x27xi1> to vector<27x27xi32>
    %169 = arith.sitofp %168 : vector<27x27xi32> to vector<27x27xf32>
    %cst_64 = arith.constant dense<0.000000e+00> : vector<8x27xf32>
    %170 = tpu.matmul %162, %169, %cst_64 {dimension_numbers = #tpu.dot_dimension_numbers<[1], [0], [0], [1], [0, 0, 1, 1], [], []>} : vector<8x27xf32>, vector<27x27xf32>, vector<8x27xf32> -> vector<8x27xf32>
    %171 = vector.extract_strided_slice %161 {offsets = [0, 4], sizes = [8, 27], strides = [1, 1]} : vector<8x32xf32> to vector<8x27xf32>
    %172 = tpu.iota {dimensions = array<i32: 0>} : vector<27x27xi32>
    %173 = tpu.iota {dimensions = array<i32: 1>} : vector<27x27xi32>
    %174 = arith.addi %172, %173 : vector<27x27xi32>
    %c26_i32_65 = arith.constant 26 : i32
    %175 = vector.broadcast %c26_i32_65 : i32 to vector<27x27xi32>
    %176 = arith.cmpi eq, %174, %175 : vector<27x27xi32>
    %177 = arith.extui %176 : vector<27x27xi1> to vector<27x27xi32>
    %178 = arith.sitofp %177 : vector<27x27xi32> to vector<27x27xf32>
    %cst_66 = arith.constant dense<0.000000e+00> : vector<8x27xf32>
    %179 = tpu.matmul %171, %178, %cst_66 {dimension_numbers = #tpu.dot_dimension_numbers<[1], [0], [0], [1], [0, 0, 1, 1], [], []>} : vector<8x27xf32>, vector<27x27xf32>, vector<8x27xf32> -> vector<8x27xf32>
    %180 = vector.extract_strided_slice %161 {offsets = [0, 0], sizes = [8, 5], strides = [1, 1]} : vector<8x32xf32> to vector<8x5xf32>
    %181 = tpu.concatenate %170, %180 in 1 : vector<8x27xf32>, vector<8x5xf32> -> vector<8x32xf32>
    %182 = vector.extract_strided_slice %161 {offsets = [0, 27], sizes = [8, 5], strides = [1, 1]} : vector<8x32xf32> to vector<8x5xf32>
    %183 = tpu.concatenate %182, %179 in 1 : vector<8x5xf32>, vector<8x27xf32> -> vector<8x32xf32>
    %184 = tpu.concatenate %181, %161, %183 in 0 : vector<8x32xf32>, vector<8x32xf32>, vector<8x32xf32> -> vector<24x32xf32>
    %c3 = arith.constant 3 : index
    %c0_67 = arith.constant 0 : index
    %c0_68 = arith.constant 0 : index
    %185 = vector.load %arg2[%c3, %c0_67, %c0_68] : memref<4x16x24xf32, #tpu.memory_space<vmem>>, vector<1x16x24xf32>
    %186 = vector.shape_cast %185 : vector<1x16x24xf32> to vector<16x24xf32>
    %cst_69 = arith.constant dense<0.000000e+00> : vector<16x32xf32>
    %187 = tpu.matmul %186, %184, %cst_69 {dimension_numbers = #tpu.dot_dimension_numbers<[1], [0], [0], [1], [0, 0, 1, 1], [], []>} : vector<16x24xf32>, vector<24x32xf32>, vector<16x32xf32> -> vector<16x32xf32>
    %c3_70 = arith.constant 3 : index
    %c0_71 = arith.constant 0 : index
    %c0_72 = arith.constant 0 : index
    %188 = vector.load %arg3[%c3_70, %c0_71, %c0_72] : memref<4x16x1xf32, #tpu.memory_space<vmem>>, vector<1x16x1xf32>
    %189 = vector.shape_cast %188 : vector<1x16x1xf32> to vector<16x1xf32>
    %190 = vector.broadcast %189 : vector<16x1xf32> to vector<16x32xf32>
    %191 = arith.addf %187, %190 : vector<16x32xf32>
    %192 = vector.extract_strided_slice %191 {offsets = [0, 0], sizes = [8, 32], strides = [1, 1]} : vector<16x32xf32> to vector<8x32xf32>
    %193 = math.tanh %192 : vector<8x32xf32>
    %194 = vector.extract_strided_slice %191 {offsets = [8, 0], sizes = [8, 32], strides = [1, 1]} : vector<16x32xf32> to vector<8x32xf32>
    %195 = arith.negf %194 : vector<8x32xf32>
    %196 = math.exp %195 : vector<8x32xf32>
    %cst_73 = arith.constant 1.000000e+00 : f32
    %197 = vector.broadcast %cst_73 : f32 to vector<8x32xf32>
    %198 = arith.addf %197, %196 : vector<8x32xf32>
    %199 = arith.divf %197, %198 : vector<8x32xf32>
    %200 = arith.mulf %193, %199 : vector<8x32xf32>
    %cst_74 = arith.constant 0.000000e+00 : f32
    %201 = vector.broadcast %cst_74 : f32 to vector<8x32xf32>
    %202 = arith.cmpf oge, %200, %201 : vector<8x32xf32>
    %cst_75 = arith.constant 2.000000e-01 : f32
    %203 = vector.broadcast %cst_75 : f32 to vector<8x32xf32>
    %204 = arith.mulf %203, %200 : vector<8x32xf32>
    %205 = arith.select %202, %200, %204 : vector<8x32xi1>, vector<8x32xf32>
    %206 = tpu.concatenate %156, %205 in 0 : vector<8x32xf32>, vector<8x32xf32> -> vector<16x32xf32>
    %c3_76 = arith.constant 3 : index
    %c0_77 = arith.constant 0 : index
    %c0_78 = arith.constant 0 : index
    %207 = vector.load %arg4[%c3_76, %c0_77, %c0_78] : memref<4x8x16xf32, #tpu.memory_space<vmem>>, vector<1x8x16xf32>
    %208 = vector.shape_cast %207 : vector<1x8x16xf32> to vector<8x16xf32>
    %cst_79 = arith.constant dense<0.000000e+00> : vector<8x32xf32>
    %209 = tpu.matmul %208, %206, %cst_79 {dimension_numbers = #tpu.dot_dimension_numbers<[1], [0], [0], [1], [0, 0, 1, 1], [], []>} : vector<8x16xf32>, vector<16x32xf32>, vector<8x32xf32> -> vector<8x32xf32>
    %c3_80 = arith.constant 3 : index
    %c0_81 = arith.constant 0 : index
    %c0_82 = arith.constant 0 : index
    %210 = vector.load %arg5[%c3_80, %c0_81, %c0_82] : memref<4x8x1xf32, #tpu.memory_space<vmem>>, vector<1x8x1xf32>
    %211 = vector.shape_cast %210 : vector<1x8x1xf32> to vector<8x1xf32>
    %212 = vector.broadcast %211 : vector<8x1xf32> to vector<8x32xf32>
    %213 = arith.addf %209, %212 : vector<8x32xf32>
    %c0_83 = arith.constant 0 : index
    %c0_84 = arith.constant 0 : index
    %c0_85 = arith.constant 0 : index
    %214 = vector.load %arg6[%c0_83, %c0_84, %c0_85] : memref<1x8x32xf32, #tpu.memory_space<vmem>>, vector<1x8x32xf32>
    %215 = vector.shape_cast %214 : vector<1x8x32xf32> to vector<8x32xf32>
    %216 = vector.shape_cast %213 : vector<8x32xf32> to vector<1x8x32xf32>
    tpu.vector_store %arg6[%c0_83, %c0_84, %c0_85], %216 {strides = array<i32>} : memref<1x8x32xf32, #tpu.memory_space<vmem>>, vector<1x8x32xf32>,
    return
  }
  func.func @transform_0(%arg0: i32) -> (i32, i32, i32) {
    %c0_i32 = arith.constant 0 : i32
    %c0_i32_0 = arith.constant 0 : i32
    %c0_i32_1 = arith.constant 0 : i32
    return %arg0, %c0_i32, %c0_i32_0 : i32, i32, i32
  }
  func.func @transform_1(%arg0: i32) -> (i32, i32, i32) {
    %c0_i32 = arith.constant 0 : i32
    %c0_i32_0 = arith.constant 0 : i32
    %c0_i32_1 = arith.constant 0 : i32
    %c0_i32_2 = arith.constant 0 : i32
    return %c0_i32, %c0_i32_0, %c0_i32_1 : i32, i32, i32
  }
  func.func @transform_2(%arg0: i32) -> (i32, i32, i32) {
    %c0_i32 = arith.constant 0 : i32
    %c0_i32_0 = arith.constant 0 : i32
    %c0_i32_1 = arith.constant 0 : i32
    %c0_i32_2 = arith.constant 0 : i32
    return %c0_i32, %c0_i32_0, %c0_i32_1 : i32, i32, i32
  }
  func.func @transform_3(%arg0: i32) -> (i32, i32, i32) {
    %c0_i32 = arith.constant 0 : i32
    %c0_i32_0 = arith.constant 0 : i32
    %c0_i32_1 = arith.constant 0 : i32
    %c0_i32_2 = arith.constant 0 : i32
    return %c0_i32, %c0_i32_0, %c0_i32_1 : i32, i32, i32
  }
  func.func @transform_4(%arg0: i32) -> (i32, i32, i32) {
    %c0_i32 = arith.constant 0 : i32
    %c0_i32_0 = arith.constant 0 : i32
    %c0_i32_1 = arith.constant 0 : i32
    %c0_i32_2 = arith.constant 0 : i32
    return %c0_i32, %c0_i32_0, %c0_i32_1 : i32, i32, i32
  }
  func.func @transform_5(%arg0: i32) -> (i32, i32, i32) {
    %c0_i32 = arith.constant 0 : i32
    %c0_i32_0 = arith.constant 0 : i32
    %c0_i32_1 = arith.constant 0 : i32
    return %arg0, %c0_i32, %c0_i32_0 : i32, i32, i32
  }
}

</mosaic_0001>

<llo_original>
// kernel: tpu_custom_call.1
$region0: #{tpu_custom_call.1}
  #allocation0 [shape = 'u32[]', space=smem, size = 0x4, offset = 0x4, fixed_abs, tag = 'smem constant byte address 0x4 - core index']
  #allocation1 [shape = 'u32[72,128]{1,0:T(1,128)}', space=vmem, size = 0x9000, scoped, tag = 'internal scratch']
  %s0 = inlined_call_operand.hbm [shape: f32[2,8,32], index: 0, kind: input, shape index: {}]
  %s1 = inlined_call_operand.vmem [shape: f32[4,16,24], index: 1, kind: input, shape index: {}]
  %s2 = inlined_call_operand.vmem [shape: f32[4,16,1], index: 2, kind: input, shape index: {}]
  %s3 = inlined_call_operand.vmem [shape: f32[4,8,16], index: 3, kind: input, shape index: {}]
  %s4 = inlined_call_operand.vmem [shape: f32[4,8,1], index: 4, kind: input, shape index: {}]
  %s5 = inlined_call_operand.hbm [shape: f32[2,8,32], index: 5, kind: output, shape index: {}]
  %s6 = sld [smem:[#allocation0]]
  $region57: #{tpu_custom_call.1} parent=0
    _
  %s8 = ssub.s32 1, %s6
  %s9 = scalar_select 0, %s8, %s6
  $region1: #{tpu_custom_call.1} parent=0
    #allocation2 [shape = 'u8[8192]{0}', space=vmem, size = 0x2000, scoped, tag = 'input window, operand 0']
    #allocation3 [shape = 's32[2]{0}', space=sflag, size = 0x8, scoped, tag = 'scoped memory for tpu_custom_call.1']
    #allocation4 [shape = 's32[2]{0}', space=sflag, size = 0x8, scoped, tag = 'scoped memory for tpu_custom_call.1']
    #allocation5 [shape = 'u8[8192]{0}', space=vmem, size = 0x2000, scoped, tag = 'output window, operand 0']
    %10 = vsyncpa [#allocation3], 0
    %s11 = scalar_lea.sflag [#allocation3], 1
    %12 = vsyncpa %s11, 0
    %13 = vsyncpa [#allocation4], 0
    %s14 = scalar_lea.sflag [#allocation4], 1
    %15 = vsyncpa %s14, 0
    loop: start=0, step=1, limit=4
    $region2: #{tpu_custom_call.1} parent=1 // loop_pre_header
      _
    $region3: #{tpu_custom_call.1} parent=1 // loop_header
      %s17 = sphi 0, %s21
      %p18 = scmp.ge.s32.totalorder %s17, 4
      %s27 = sphi 0, %s29
      %s30 = sphi 0, %s27
      %s31 = sphi 0, %s30
      %s47 = sphi 0, %s31
      %s51 = sphi 0, %s51
      %s53 = sphi 0, %s51
      %s54 = sphi 0, %s53
      %s68 = sphi 0, %s54
      %s72 = sphi 0, %s72
      %s74 = sphi 0, %s72
      %s75 = sphi 0, %s74
      %s89 = sphi 0, %s75
      %s93 = sphi 0, %s93
      %s95 = sphi 0, %s93
      %s96 = sphi 0, %s95
      %s110 = sphi 0, %s96
      %s114 = sphi 0, %s114
      %s116 = sphi 0, %s114
      %s117 = sphi 0, %s116
      %s131 = sphi 0, %s117
      %s137 = sphi 0, %s139
      %s140 = sphi 0, %s137
      %s141 = sphi 0, %s140
      %s157 = sphi 0, %s141
    $region4: #{tpu_custom_call.1} parent=1 // loop_header_branch
      %20 = sbr.rel (%p18) target = $region8
    $region5: #{tpu_custom_call.1} parent=1 // loop_body
      %s22 = ssub.s32 %s17, 1
      %s23 = ssub.s32 %s17, 2
      %s24 = sadd.s32 %s17, 1
      %s25 = ssub.s32 %s17, %s24
      %p26 = scmp.eq.s32.totalorder %s25, 0
      %s28 = sadd.s32 %s27, 1
      %s29 = scalar_select %p26, %s27, %s28
      %p32 = pneg %p26
      %p33 = scmp.eq.s32.totalorder %s17, 1
      %p34 = por %p32, %p33
      %p35 = scmp.ne.s32.totalorder %s27, %s30
      %p36 = scmp.eq.s32.totalorder %s17, 0
      %p37 = por %p35, %p36
      %p38 = scmp.ne.s32.totalorder %s27, %s30
      %p39 = scmp.eq.s32.totalorder %s22, 1
      %p40 = por %p38, %p39
      %p41 = scmp.ne.s32.totalorder %s30, %s31
      %p42 = scmp.eq.s32.totalorder %s22, 0
      %p43 = por %p41, %p42
      %p44 = scmp.ne.s32.totalorder %s30, %s31
      %p45 = scmp.eq.s32.totalorder %s23, 1
      %p46 = por %p44, %p45
      %p48 = scmp.ne.s32.totalorder %s31, %s47
      %p49 = scmp.eq.s32.totalorder %s23, 0
      %p50 = por %p48, %p49
      %s52 = sadd.s32 %s51, 1
      %p55 = scmp.eq.s32.totalorder %s17, 1
      %p56 = scmp.ne.s32.totalorder %s51, %s53
      %p57 = scmp.eq.s32.totalorder %s17, 0
      %p58 = por %p56, %p57
      %p59 = scmp.ne.s32.totalorder %s51, %s53
      %p60 = scmp.eq.s32.totalorder %s22, 1
      %p61 = por %p59, %p60
      %p62 = scmp.ne.s32.totalorder %s53, %s54
      %p63 = scmp.eq.s32.totalorder %s22, 0
      %p64 = por %p62, %p63
      %p65 = scmp.ne.s32.totalorder %s53, %s54
      %p66 = scmp.eq.s32.totalorder %s23, 1
      %p67 = por %p65, %p66
      %p69 = scmp.ne.s32.totalorder %s54, %s68
      %p70 = scmp.eq.s32.totalorder %s23, 0
      %p71 = por %p69, %p70
      %s73 = sadd.s32 %s72, 1
      %p76 = scmp.eq.s32.totalorder %s17, 1
      %p77 = scmp.ne.s32.totalorder %s72, %s74
      %p78 = scmp.eq.s32.totalorder %s17, 0
      %p79 = por %p77, %p78
      %p80 = scmp.ne.s32.totalorder %s72, %s74
      %p81 = scmp.eq.s32.totalorder %s22, 1
      %p82 = por %p80, %p81
      %p83 = scmp.ne.s32.totalorder %s74, %s75
      %p84 = scmp.eq.s32.totalorder %s22, 0
      %p85 = por %p83, %p84
      %p86 = scmp.ne.s32.totalorder %s74, %s75
      %p87 = scmp.eq.s32.totalorder %s23, 1
      %p88 = por %p86, %p87
      %p90 = scmp.ne.s32.totalorder %s75, %s89
      %p91 = scmp.eq.s32.totalorder %s23, 0
      %p92 = por %p90, %p91
      %s94 = sadd.s32 %s93, 1
      %p97 = scmp.eq.s32.totalorder %s17, 1
      %p98 = scmp.ne.s32.totalorder %s93, %s95
      %p99 = scmp.eq.s32.totalorder %s17, 0
      %p100 = por %p98, %p99
      %p101 = scmp.ne.s32.totalorder %s93, %s95
      %p102 = scmp.eq.s32.totalorder %s22, 1
      %p103 = por %p101, %p102
      %p104 = scmp.ne.s32.totalorder %s95, %s96
      %p105 = scmp.eq.s32.totalorder %s22, 0
      %p106 = por %p104, %p105
      %p107 = scmp.ne.s32.totalorder %s95, %s96
      %p108 = scmp.eq.s32.totalorder %s23, 1
      %p109 = por %p107, %p108
      %p111 = scmp.ne.s32.totalorder %s96, %s110
      %p112 = scmp.eq.s32.totalorder %s23, 0
      %p113 = por %p111, %p112
      %s115 = sadd.s32 %s114, 1
      %p118 = scmp.eq.s32.totalorder %s17, 1
      %p119 = scmp.ne.s32.totalorder %s114, %s116
      %p120 = scmp.eq.s32.totalorder %s17, 0
      %p121 = por %p119, %p120
      %p122 = scmp.ne.s32.totalorder %s114, %s116
      %p123 = scmp.eq.s32.totalorder %s22, 1
      %p124 = por %p122, %p123
      %p125 = scmp.ne.s32.totalorder %s116, %s117
      %p126 = scmp.eq.s32.totalorder %s22, 0
      %p127 = por %p125, %p126
      %p128 = scmp.ne.s32.totalorder %s116, %s117
      %p129 = scmp.eq.s32.totalorder %s23, 1
      %p130 = por %p128, %p129
      %p132 = scmp.ne.s32.totalorder %s117, %s131
      %p133 = scmp.eq.s32.totalorder %s23, 0
      %p134 = por %p132, %p133
      %s135 = ssub.s32 %s17, %s24
      %p136 = scmp.eq.s32.totalorder %s135, 0
      %s138 = sadd.s32 %s137, 1
      %s139 = scalar_select %p136, %s137, %s138
      %p142 = pneg %p136
      %p143 = scmp.eq.s32.totalorder %s17, 1
      %p144 = por %p142, %p143
      %p145 = scmp.ne.s32.totalorder %s137, %s140
      %p146 = scmp.eq.s32.totalorder %s17, 0
      %p147 = por %p145, %p146
      %p148 = scmp.ne.s32.totalorder %s137, %s140
      %p149 = scmp.eq.s32.totalorder %s22, 1
      %p150 = por %p148, %p149
      %p151 = scmp.ne.s32.totalorder %s140, %s141
      %p152 = scmp.eq.s32.totalorder %s22, 0
      %p153 = por %p151, %p152
      %p154 = scmp.ne.s32.totalorder %s140, %s141
      %p155 = scmp.eq.s32.totalorder %s23, 1
      %p156 = por %p154, %p155
      %p158 = scmp.ne.s32.totalorder %s141, %s157
      %p159 = scmp.eq.s32.totalorder %s23, 0
      %p160 = por %p158, %p159
      %p161 = scmp.le.s32.totalorder 1, %s17
      %p162 = scmp.lt.s32.totalorder %s17, 3
      %p163 = pnand %p161, %p162
      %p164 = pneg %p163
      // Predicated region
      $region9: #{tpu_custom_call.1} parent=5 // pred_check
        _
      $region10: #{tpu_custom_call.1} parent=5 // pred_check_branch
        %166 = sbr.rel (%p163) target = $region12
      $region11: #{tpu_custom_call.1} parent=5 // pred_region
        %s167 = ssub.s32 %s17, 1
        // Predicated region
        $region13: #{tpu_custom_call.1} parent=11 // pred_check
          %p168 = pneg %p64
        $region14: #{tpu_custom_call.1} parent=11 // pred_check_branch
          %170 = sbr.rel (%p168) target = $region16
        $region15: #{tpu_custom_call.1} parent=11 // pred_region
          _
        $region16: #{tpu_custom_call.1} parent=11 // pred_fallthru
          _
        // Predicated region
        $region17: #{tpu_custom_call.1} parent=11 // pred_check
          %p171 = pneg %p85
        $region18: #{tpu_custom_call.1} parent=11 // pred_check_branch
          %173 = sbr.rel (%p171) target = $region20
        $region19: #{tpu_custom_call.1} parent=11 // pred_region
          _
        $region20: #{tpu_custom_call.1} parent=11 // pred_fallthru
          _
        // Predicated region
        $region21: #{tpu_custom_call.1} parent=11 // pred_check
          %p174 = pneg %p106
        $region22: #{tpu_custom_call.1} parent=11 // pred_check_branch
          %176 = sbr.rel (%p174) target = $region24
        $region23: #{tpu_custom_call.1} parent=11 // pred_region
          _
        $region24: #{tpu_custom_call.1} parent=11 // pred_fallthru
          _
        // Predicated region
        $region25: #{tpu_custom_call.1} parent=11 // pred_check
          %p177 = pneg %p127
        $region26: #{tpu_custom_call.1} parent=11 // pred_check_branch
          %179 = sbr.rel (%p177) target = $region28
        $region27: #{tpu_custom_call.1} parent=11 // pred_region
          _
        $region28: #{tpu_custom_call.1} parent=11 // pred_fallthru
          _
      $region12: #{tpu_custom_call.1} parent=5 // pred_fallthru
        _
      %p180 = scmp.lt.s32.totalorder %s17, 2
      // Predicated region
      $region29: #{tpu_custom_call.1} parent=5 // pred_check
        %p181 = pneg %p180
      $region30: #{tpu_custom_call.1} parent=5 // pred_check_branch
        %183 = sbr.rel (%p181) target = $region32
      $region31: #{tpu_custom_call.1} parent=5 // pred_region
        // Predicated region
        $region33: #{tpu_custom_call.1} parent=31 // pred_check
          %p184 = pneg %p37
        $region34: #{tpu_custom_call.1} parent=31 // pred_check_branch
          %186 = sbr.rel (%p184) target = $region36
        $region35: #{tpu_custom_call.1} parent=31 // pred_region
          %s187 = sand.u32 %s27, 1
          %s188 = scalar_lea.sflag [#allocation3], %s187
          %s189 = sand.u32 %s27, 1
          %s190 = smul.addr %s189, 8
          %s191 = scalar_lea.vmem [#allocation2], %s190
          %193 = vsyncadd %s188, 0
          %s194 = smul.addr %s17, 8
          %s195 = scalar_lea.hbm %s0, %s194
          %s197 = sshll.u32 %s195, 4
          %s198 = int_to_ptr.hbm [resolvable:$true] %s197
          %s199 = sshll.u32 %s191, 4
          %s200 = int_to_ptr.vmem [resolvable:$true] %s199
          %202 = dma.hbm_to_vmem [thread:$0]  %s198, 128, %s200, %s188
        $region36: #{tpu_custom_call.1} parent=31 // pred_fallthru
          _
      $region32: #{tpu_custom_call.1} parent=5 // pred_fallthru
        _
      %p203 = scmp.le.s32.totalorder 1, %s17
      %p204 = scmp.lt.s32.totalorder %s17, 3
      %p205 = pnand %p203, %p204
      %p206 = pneg %p205
      // Predicated region
      $region37: #{tpu_custom_call.1} parent=5 // pred_check
        _
      $region38: #{tpu_custom_call.1} parent=5 // pred_check_branch
        %208 = sbr.rel (%p205) target = $region40
      $region39: #{tpu_custom_call.1} parent=5 // pred_region
        %s209 = ssub.s32 %s17, 1
        %s210 = sand.u32 %s30, 1
        %s211 = scalar_lea.sflag [#allocation3], %s210
        %s212 = sand.u32 %s30, 1
        %s213 = smul.addr %s212, 8
        %s214 = scalar_lea.vmem [#allocation2], %s213
        // Predicated region
        $region41: #{tpu_custom_call.1} parent=39 // pred_check
          %p215 = pneg %p43
        $region42: #{tpu_custom_call.1} parent=39 // pred_check_branch
          %217 = sbr.rel (%p215) target = $region44
        $region43: #{tpu_custom_call.1} parent=39 // pred_region
          %219 = dma.done %s211, 128
        $region44: #{tpu_custom_call.1} parent=39 // pred_fallthru
          _
        %s220 = sand.u32 %s30, 1
        %s221 = scalar_lea.sflag [#allocation3], %s220
        %s222 = sand.u32 %s30, 1
        %s223 = smul.addr %s222, 8
        %s224 = scalar_lea.vmem [#allocation2], %s223
        %p225 = pneg %p43
        %p226 = pneg %p40
        %p227 = pneg %p64
        %p228 = pneg %p61
        %p229 = pneg %p85
        %p230 = pneg %p82
        %p231 = pneg %p106
        %p232 = pneg %p103
        %p233 = pneg %p127
        %p234 = pneg %p124
        %p235 = pneg %p153
        %p236 = pneg %p150
        %s237 = sand.u32 %s140, 1
        %s238 = scalar_lea.sflag [#allocation4], %s237
        %s239 = sand.u32 %s140, 1
        %s240 = smul.addr %s239, 8
        %s241 = scalar_lea.vmem [#allocation5], %s240
        %v242 = vld [vmem:[%s214] sm:$0xff]
        %vm243 = vcmp.ge.f32.partialorder %v242, 0.0
        %v244 = vmul.f32 %v242, 0.2
        %v245 = vsel %vm243, %v242, %v244
        %247 = vrot.lane.b32.xlu0 %v245, 127
        %v248 = vpop.permute.xlu0 %247
        %250 = vrot.lane.b32.xlu0 %v245, 1
        %v251 = vpop.permute.xlu0 %250
        %vm253 = vcmask 7168
        %v254 = vsel %vm253, %v248, %v251
        %vm255 = vcmask 252928
        %v256 = vsel %vm255, %v248, %v251
        %v257 = vld [vmem:[%s1] sm:$0xff]
        %v258 = vld [vmem:[%s1 + $0x8] sm:$0xff]
        %v259 = vld [vmem:[%s2] sm:$0xff]
        %v260 = vld [vmem:[%s2 + $0x8] sm:$0xff]
        %262 = vset.pattern.permute.xlu0 0
        %263 = vperm.xlu0 %262, %v259
        %v264 = vpop.permute.xlu0 %263
        %267 = vset.pattern.permute.xlu0 0
        %268 = vperm.xlu0 %267, %v260
        %v269 = vpop.permute.xlu0 %268
        %vm271 = vcmask 195584
        %v273 = vsel %vm271, %v257, 0
        %v276 = vsel %vm271, %v258, 0
        %278 = vmatpush.msra.mxu0 0.0
        %279 = vmatpush.msra.mxu0 0.0
        %280 = vmatpush.msra.mxu0 0.0
        %281 = vmatpush.msra.mxu0 0.0
        %282 = vmatpush.msra.mxu0 0.0
        %283 = vmatpush.msra.mxu0 0.0
        %284 = vmatpush.msra.mxu0 0.0
        %285 = vmatpush.msra.mxu0 0.0
        %286 = vmatpush.msra.mxu0 0.0
        %287 = vmatpush.msra.mxu0 0.0
        %288 = vmatpush.msra.mxu0 0.0
        %289 = vmatpush.msra.mxu0 0.0
        %290 = vmatpush.msra.mxu0 0.0
        %291 = vmatpush.msra.mxu0 %v256
        %292 = vmatpush.msra.mxu0 %v245
        %293 = vmatpush.msra.mxu0 %v254
        %294 = vmatmul.f32.gmra.mxu0 %v273
        %v295 = vpop.f32.mrf.mxu0
        %v296 = vadd.f32 %v264, %v295
        %297 = vmatmul.f32.gmra.mxu0 %v276
        %v298 = vpop.f32.mrf.mxu0
        %v299 = vadd.f32 %v269, %v298
        %300 = vdwg.mxu0
        %v301 = vtanh.pop %v296
        %v302 = vxor.u32 %v299, 2147483648
        %v303 = vmul.f32 %v302, 1.442695
        %v304 = vpow.pop %v303
        %v305 = vadd.f32 %v304, 1.0
        %v306 = vrcp.pop %v305
        %v307 = vmul.f32 %v305, %v306
        %v308 = vsub.f32 1.0, %v307
        %v309 = vmul.f32 %v306, %v308
        %v310 = vadd.f32 %v306, %v309
        %vm311 = vweird.f32 %v305
        %vm312 = vweird.f32 %v306
        %vm313 = vmor %vm311, %vm312
        %v314 = vsel %vm313, %v306, %v310
        %v315 = vand.u32 2147483647, %v305
        %vm316 = vcmp.eq.f32.partialorder %v315, 8.507059e+37
        %v317 = vand.u32 %v305, 2147483648
        %v318 = vor.u32 1.1754944e-38, %v317
        %v319 = vsel %vm316, %v318, %v314
        %v320 = vmul.f32 1.0, %v319
        %v321 = vmul.f32 %v301, %v320
        %vm322 = vcmp.ge.f32.partialorder %v321, 0.0
        %v323 = vmul.f32 %v321, 0.2
        %v324 = vsel %vm322, %v321, %v323
        %v325 = vld [vmem:[%s3] sm:$0xff]
        %v326 = vld [vmem:[%s4] sm:$0xff]
        %328 = vset.pattern.permute.xlu0 0
        %329 = vperm.xlu0 %328, %v326
        %v330 = vpop.permute.xlu0 %329
        %vm332 = vcmask 130048
        %v334 = vsel %vm332, %v325, 0
        %336 = vmatpush.msra.mxu0 0.0
        %337 = vmatpush.msra.mxu0 0.0
        %338 = vmatpush.msra.mxu0 0.0
        %339 = vmatpush.msra.mxu0 0.0
        %340 = vmatpush.msra.mxu0 0.0
        %341 = vmatpush.msra.mxu0 0.0
        %342 = vmatpush.msra.mxu0 0.0
        %343 = vmatpush.msra.mxu0 0.0
        %344 = vmatpush.msra.mxu0 0.0
        %345 = vmatpush.msra.mxu0 0.0
        %346 = vmatpush.msra.mxu0 0.0
        %347 = vmatpush.msra.mxu0 0.0
        %348 = vmatpush.msra.mxu0 0.0
        %349 = vmatpush.msra.mxu0 0.0
        %350 = vmatpush.msra.mxu0 %v324
        %351 = vmatpush.msra.mxu0 %v242
        %352 = vmatmul.f32.gmra.mxu0 %v334
        %v353 = vpop.f32.mrf.mxu0
        %v354 = vadd.f32 %v330, %v353
        %355 = vdwg.mxu0
        %vm356 = vcmp.ge.f32.partialorder %v354, 0.0
        %v357 = vmul.f32 %v354, 0.2
        %v358 = vsel %vm356, %v354, %v357
        %v359 = vlaneseq
        %v360 = vshrl.u32 %v359, 7
        %v361 = vlaneseq
        %v362 = vand.u32 %v361, 127
        %v363 = vadd.s32 %v360, %v362
        %vm364 = vcmp.eq.s32.totalorder %v363, 2
        %v365 = vsel %vm364, 1, 0
        %v366 = vcvt.s32.f32 %v365
        %368 = vrot.lane.b32.xlu0 %v358, 127
        %v369 = vpop.permute.xlu0 %368
        %vm370 = vcmask 23552
        %v371 = vsel %vm370, %v369, 0
        %vm373 = vcmask 1042432
        %v375 = vsel %vm373, %v366, 0
        %377 = vmatpush.msra.mxu0 0.0
        %378 = vmatpush.msra.mxu0 0.0
        %379 = vmatpush.msra.mxu0 0.0
        %380 = vmatpush.msra.mxu0 0.0
        %381 = vmatpush.msra.mxu0 0.0
        %382 = vmatpush.msra.mxu0 0.0
        %383 = vmatpush.msra.mxu0 0.0
        %384 = vmatpush.msra.mxu0 0.0
        %385 = vmatpush.msra.mxu0 0.0
        %386 = vmatpush.msra.mxu0 0.0
        %387 = vmatpush.msra.mxu0 0.0
        %388 = vmatpush.msra.mxu0 0.0
        %389 = vmatpush.msra.mxu0 0.0
        %390 = vmatpush.msra.mxu0 0.0
        %391 = vmatpush.msra.mxu0 0.0
        %392 = vmatpush.msra.mxu0 %v375
        %393 = vmatmul.f32.gmra.mxu0 %v371
        %v394 = vpop.f32.mrf.mxu0
        %v395 = vadd.f32 0.0, %v394
        %396 = vdwg.mxu0
        %397 = vrot.lane.b32.xlu0 %v358, 100
        %v398 = vpop.permute.xlu0 %397
        %v399 = vsel %vm370, %v398, 0
        %401 = vmatpush.msra.mxu0 0.0
        %402 = vmatpush.msra.mxu0 0.0
        %403 = vmatpush.msra.mxu0 0.0
        %404 = vmatpush.msra.mxu0 0.0
        %405 = vmatpush.msra.mxu0 0.0
        %406 = vmatpush.msra.mxu0 0.0
        %407 = vmatpush.msra.mxu0 0.0
        %408 = vmatpush.msra.mxu0 0.0
        %409 = vmatpush.msra.mxu0 0.0
        %410 = vmatpush.msra.mxu0 0.0
        %411 = vmatpush.msra.mxu0 0.0
        %412 = vmatpush.msra.mxu0 0.0
        %413 = vmatpush.msra.mxu0 0.0
        %414 = vmatpush.msra.mxu0 0.0
        %415 = vmatpush.msra.mxu0 0.0
        %416 = vmatpush.msra.mxu0 %v375
        %417 = vmatmul.f32.gmra.mxu0 %v399
        %v418 = vpop.f32.mrf.mxu0
        %v419 = vadd.f32 0.0, %v418
        %420 = vdwg.mxu0
        %421 = vrot.lane.b32.xlu0 %v358, 3
        %v422 = vpop.permute.xlu0 %421
        %v424 = vsel %vm370, %v395, %v422
        %425 = vrot.lane.b32.xlu0 %v358, 125
        %v426 = vpop.permute.xlu0 %425
        %429 = vrot.lane.b32.xlu0 %v419, 29
        %v430 = vpop.permute.xlu0 %429
        %vm432 = vcmask 236544
        %v433 = vsel %vm432, %v426, %v430
        %s434 = scalar_lea.vmem %s1, 16
        %v435 = vld [vmem:[%s434] sm:$0xff]
        %v436 = vld [vmem:[%s434 + $0x8] sm:$0xff]
        %s437 = scalar_lea.vmem %s2, 16
        %v438 = vld [vmem:[%s437] sm:$0xff]
        %v439 = vld [vmem:[%s437 + $0x8] sm:$0xff]
        %441 = vset.pattern.permute.xlu0 0
        %442 = vperm.xlu0 %441, %v438
        %v443 = vpop.permute.xlu0 %442
        %446 = vset.pattern.permute.xlu0 0
        %447 = vperm.xlu0 %446, %v439
        %v448 = vpop.permute.xlu0 %447
        %v451 = vsel %vm271, %v435, 0
        %v454 = vsel %vm271, %v436, 0
        %456 = vmatpush.msra.mxu0 0.0
        %457 = vmatpush.msra.mxu0 0.0
        %458 = vmatpush.msra.mxu0 0.0
        %459 = vmatpush.msra.mxu0 0.0
        %460 = vmatpush.msra.mxu0 0.0
        %461 = vmatpush.msra.mxu0 0.0
        %462 = vmatpush.msra.mxu0 0.0
        %463 = vmatpush.msra.mxu0 0.0
        %464 = vmatpush.msra.mxu0 0.0
        %465 = vmatpush.msra.mxu0 0.0
        %466 = vmatpush.msra.mxu0 0.0
        %467 = vmatpush.msra.mxu0 0.0
        %468 = vmatpush.msra.mxu0 0.0
        %469 = vmatpush.msra.mxu0 %v433
        %470 = vmatpush.msra.mxu0 %v358
        %471 = vmatpush.msra.mxu0 %v424
        %472 = vmatmul.f32.gmra.mxu0 %v451
        %v473 = vpop.f32.mrf.mxu0
        %v474 = vadd.f32 %v443, %v473
        %475 = vmatmul.f32.gmra.mxu0 %v454
        %v476 = vpop.f32.mrf.mxu0
        %v477 = vadd.f32 %v448, %v476
        %478 = vdwg.mxu0
        %v479 = vtanh.pop %v474
        %v480 = vxor.u32 %v477, 2147483648
        %v481 = vmul.f32 %v480, 1.442695
        %v482 = vpow.pop %v481
        %v483 = vadd.f32 %v482, 1.0
        %v484 = vrcp.pop %v483
        %v485 = vmul.f32 %v483, %v484
        %v486 = vsub.f32 1.0, %v485
        %v487 = vmul.f32 %v484, %v486
        %v488 = vadd.f32 %v484, %v487
        %vm489 = vweird.f32 %v483
        %vm490 = vweird.f32 %v484
        %vm491 = vmor %vm489, %vm490
        %v492 = vsel %vm491, %v484, %v488
        %v493 = vand.u32 2147483647, %v483
        %vm494 = vcmp.eq.f32.partialorder %v493, 8.507059e+37
        %v495 = vand.u32 %v483, 2147483648
        %v496 = vor.u32 1.1754944e-38, %v495
        %v497 = vsel %vm494, %v496, %v492
        %v498 = vmul.f32 1.0, %v497
        %v499 = vmul.f32 %v479, %v498
        %vm500 = vcmp.ge.f32.partialorder %v499, 0.0
        %v501 = vmul.f32 %v499, 0.2
        %v502 = vsel %vm500, %v499, %v501
        %s503 = scalar_lea.vmem %s3, 8
        %v504 = vld [vmem:[%s503] sm:$0xff]
        %s505 = scalar_lea.vmem %s4, 8
        %v506 = vld [vmem:[%s505] sm:$0xff]
        %508 = vset.pattern.permute.xlu0 0
        %509 = vperm.xlu0 %508, %v506
        %v510 = vpop.permute.xlu0 %509
        %v513 = vsel %vm332, %v504, 0
        %515 = vmatpush.msra.mxu0 0.0
        %516 = vmatpush.msra.mxu0 0.0
        %517 = vmatpush.msra.mxu0 0.0
        %518 = vmatpush.msra.mxu0 0.0
        %519 = vmatpush.msra.mxu0 0.0
        %520 = vmatpush.msra.mxu0 0.0
        %521 = vmatpush.msra.mxu0 0.0
        %522 = vmatpush.msra.mxu0 0.0
        %523 = vmatpush.msra.mxu0 0.0
        %524 = vmatpush.msra.mxu0 0.0
        %525 = vmatpush.msra.mxu0 0.0
        %526 = vmatpush.msra.mxu0 0.0
        %527 = vmatpush.msra.mxu0 0.0
        %528 = vmatpush.msra.mxu0 0.0
        %529 = vmatpush.msra.mxu0 %v502
        %530 = vmatpush.msra.mxu0 %v354
        %531 = vmatmul.f32.gmra.mxu0 %v513
        %v532 = vpop.f32.mrf.mxu0
        %v533 = vadd.f32 %v510, %v532
        %534 = vdwg.mxu0
        %vm535 = vcmp.ge.f32.partialorder %v533, 0.0
        %v536 = vmul.f32 %v533, 0.2
        %v537 = vsel %vm535, %v533, %v536
        %v538 = vadd.s32 %v360, 8
        %v539 = vadd.s32 %v538, %v362
        %vm540 = vcmp.eq.s32.totalorder %v363, 8
        %vm541 = vcmp.eq.s32.totalorder %v539, 8
        %v542 = vsel %vm540, 1, 0
        %v543 = vsel %vm541, 1, 0
        %v544 = vcvt.s32.f32 %v542
        %v545 = vcvt.s32.f32 %v543
        %547 = vrot.lane.b32.xlu0 %v537, 127
        %v548 = vpop.permute.xlu0 %547
        %vm549 = vcmask 72704
        %v550 = vsel %vm549, %v548, 0
        %vm552 = vcmask 1040384
        %v554 = vsel %vm552, %v545, 0
        %556 = vmatpush.msra.mxu0 0.0
        %557 = vmatpush.msra.mxu0 0.0
        %558 = vmatpush.msra.mxu0 0.0
        %559 = vmatpush.msra.mxu0 0.0
        %560 = vmatpush.msra.mxu0 0.0
        %561 = vmatpush.msra.mxu0 0.0
        %562 = vmatpush.msra.mxu0 0.0
        %563 = vmatpush.msra.mxu0 0.0
        %564 = vmatpush.msra.mxu0 0.0
        %565 = vmatpush.msra.mxu0 0.0
        %566 = vmatpush.msra.mxu0 0.0
        %567 = vmatpush.msra.mxu0 0.0
        %568 = vmatpush.msra.mxu0 0.0
        %569 = vmatpush.msra.mxu0 0.0
        %570 = vmatpush.msra.mxu0 %v554
        %571 = vmatpush.msra.mxu0 %v544
        %572 = vmatmul.f32.gmra.mxu0 %v550
        %v573 = vpop.f32.mrf.mxu0
        %v574 = vadd.f32 0.0, %v573
        %575 = vdwg.mxu0
        %576 = vrot.lane.b32.xlu0 %v537, 106
        %v577 = vpop.permute.xlu0 %576
        %v578 = vsel %vm549, %v577, 0
        %580 = vmatpush.msra.mxu0 0.0
        %581 = vmatpush.msra.mxu0 0.0
        %582 = vmatpush.msra.mxu0 0.0
        %583 = vmatpush.msra.mxu0 0.0
        %584 = vmatpush.msra.mxu0 0.0
        %585 = vmatpush.msra.mxu0 0.0
        %586 = vmatpush.msra.mxu0 0.0
        %587 = vmatpush.msra.mxu0 0.0
        %588 = vmatpush.msra.mxu0 0.0
        %589 = vmatpush.msra.mxu0 0.0
        %590 = vmatpush.msra.mxu0 0.0
        %591 = vmatpush.msra.mxu0 0.0
        %592 = vmatpush.msra.mxu0 0.0
        %593 = vmatpush.msra.mxu0 0.0
        %594 = vmatpush.msra.mxu0 %v554
        %595 = vmatpush.msra.mxu0 %v544
        %596 = vmatmul.f32.gmra.mxu0 %v578
        %v597 = vpop.f32.mrf.mxu0
        %v598 = vadd.f32 0.0, %v597
        %599 = vdwg.mxu0
        %600 = vrot.lane.b32.xlu0 %v537, 9
        %v601 = vpop.permute.xlu0 %600
        %v603 = vsel %vm549, %v574, %v601
        %604 = vrot.lane.b32.xlu0 %v537, 119
        %v605 = vpop.permute.xlu0 %604
        %608 = vrot.lane.b32.xlu0 %v598, 23
        %v609 = vpop.permute.xlu0 %608
        %vm611 = vcmask 187392
        %v612 = vsel %vm611, %v605, %v609
        %s613 = scalar_lea.vmem %s1, 32
        %v614 = vld [vmem:[%s613] sm:$0xff]
        %v615 = vld [vmem:[%s613 + $0x8] sm:$0xff]
        %s616 = scalar_lea.vmem %s2, 32
        %v617 = vld [vmem:[%s616] sm:$0xff]
        %v618 = vld [vmem:[%s616 + $0x8] sm:$0xff]
        %620 = vset.pattern.permute.xlu0 0
        %621 = vperm.xlu0 %620, %v617
        %v622 = vpop.permute.xlu0 %621
        %625 = vset.pattern.permute.xlu0 0
        %626 = vperm.xlu0 %625, %v618
        %v627 = vpop.permute.xlu0 %626
        %v630 = vsel %vm271, %v614, 0
        %v633 = vsel %vm271, %v615, 0
        %635 = vmatpush.msra.mxu0 0.0
        %636 = vmatpush.msra.mxu0 0.0
        %637 = vmatpush.msra.mxu0 0.0
        %638 = vmatpush.msra.mxu0 0.0
        %639 = vmatpush.msra.mxu0 0.0
        %640 = vmatpush.msra.mxu0 0.0
        %641 = vmatpush.msra.mxu0 0.0
        %642 = vmatpush.msra.mxu0 0.0
        %643 = vmatpush.msra.mxu0 0.0
        %644 = vmatpush.msra.mxu0 0.0
        %645 = vmatpush.msra.mxu0 0.0
        %646 = vmatpush.msra.mxu0 0.0
        %647 = vmatpush.msra.mxu0 0.0
        %648 = vmatpush.msra.mxu0 %v612
        %649 = vmatpush.msra.mxu0 %v537
        %650 = vmatpush.msra.mxu0 %v603
        %651 = vmatmul.f32.gmra.mxu0 %v630
        %v652 = vpop.f32.mrf.mxu0
        %v653 = vadd.f32 %v622, %v652
        %654 = vmatmul.f32.gmra.mxu0 %v633
        %v655 = vpop.f32.mrf.mxu0
        %v656 = vadd.f32 %v627, %v655
        %657 = vdwg.mxu0
        %v658 = vtanh.pop %v653
        %v659 = vxor.u32 %v656, 2147483648
        %v660 = vmul.f32 %v659, 1.442695
        %v661 = vpow.pop %v660
        %v662 = vadd.f32 %v661, 1.0
        %v663 = vrcp.pop %v662
        %v664 = vmul.f32 %v662, %v663
        %v665 = vsub.f32 1.0, %v664
        %v666 = vmul.f32 %v663, %v665
        %v667 = vadd.f32 %v663, %v666
        %vm668 = vweird.f32 %v662
        %vm669 = vweird.f32 %v663
        %vm670 = vmor %vm668, %vm669
        %v671 = vsel %vm670, %v663, %v667
        %v672 = vand.u32 2147483647, %v662
        %vm673 = vcmp.eq.f32.partialorder %v672, 8.507059e+37
        %v674 = vand.u32 %v662, 2147483648
        %v675 = vor.u32 1.1754944e-38, %v674
        %v676 = vsel %vm673, %v675, %v671
        %v677 = vmul.f32 1.0, %v676
        %v678 = vmul.f32 %v658, %v677
        %vm679 = vcmp.ge.f32.partialorder %v678, 0.0
        %v680 = vmul.f32 %v678, 0.2
        %v681 = vsel %vm679, %v678, %v680
        %s682 = scalar_lea.vmem %s3, 16
        %v683 = vld [vmem:[%s682] sm:$0xff]
        %s684 = scalar_lea.vmem %s4, 16
        %v685 = vld [vmem:[%s684] sm:$0xff]
        %687 = vset.pattern.permute.xlu0 0
        %688 = vperm.xlu0 %687, %v685
        %v689 = vpop.permute.xlu0 %688
        %v692 = vsel %vm332, %v683, 0
        %694 = vmatpush.msra.mxu0 0.0
        %695 = vmatpush.msra.mxu0 0.0
        %696 = vmatpush.msra.mxu0 0.0
        %697 = vmatpush.msra.mxu0 0.0
        %698 = vmatpush.msra.mxu0 0.0
        %699 = vmatpush.msra.mxu0 0.0
        %700 = vmatpush.msra.mxu0 0.0
        %701 = vmatpush.msra.mxu0 0.0
        %702 = vmatpush.msra.mxu0 0.0
        %703 = vmatpush.msra.mxu0 0.0
        %704 = vmatpush.msra.mxu0 0.0
        %705 = vmatpush.msra.mxu0 0.0
        %706 = vmatpush.msra.mxu0 0.0
        %707 = vmatpush.msra.mxu0 0.0
        %708 = vmatpush.msra.mxu0 %v681
        %709 = vmatpush.msra.mxu0 %v533
        %710 = vmatmul.f32.gmra.mxu0 %v692
        %v711 = vpop.f32.mrf.mxu0
        %v712 = vadd.f32 %v689, %v711
        %713 = vdwg.mxu0
        %vm714 = vcmp.ge.f32.partialorder %v712, 0.0
        %v715 = vmul.f32 %v712, 0.2
        %v716 = vsel %vm714, %v712, %v715
        %v717 = vadd.s32 %v360, 16
        %v718 = vadd.s32 %v360, 24
        %v719 = vadd.s32 %v717, %v362
        %v720 = vadd.s32 %v718, %v362
        %vm721 = vcmp.eq.s32.totalorder %v363, 26
        %vm722 = vcmp.eq.s32.totalorder %v539, 26
        %vm723 = vcmp.eq.s32.totalorder %v719, 26
        %vm724 = vcmp.eq.s32.totalorder %v720, 26
        %v725 = vsel %vm721, 1, 0
        %v726 = vsel %vm722, 1, 0
        %v727 = vsel %vm723, 1, 0
        %v728 = vsel %vm724, 1, 0
        %v729 = vcvt.s32.f32 %v725
        %v730 = vcvt.s32.f32 %v726
        %v731 = vcvt.s32.f32 %v727
        %v732 = vcvt.s32.f32 %v728
        %734 = vrot.lane.b32.xlu0 %v716, 127
        %v735 = vpop.permute.xlu0 %734
        %vm736 = vcmask 220160
        %v737 = vsel %vm736, %v735, 0
        %v740 = vsel %vm373, %v732, 0
        %742 = vmatpush.msra.mxu0 0.0
        %743 = vmatpush.msra.mxu0 0.0
        %744 = vmatpush.msra.mxu0 0.0
        %745 = vmatpush.msra.mxu0 0.0
        %746 = vmatpush.msra.mxu0 0.0
        %747 = vmatpush.msra.mxu0 0.0
        %748 = vmatpush.msra.mxu0 0.0
        %749 = vmatpush.msra.mxu0 0.0
        %750 = vmatpush.msra.mxu0 0.0
        %751 = vmatpush.msra.mxu0 0.0
        %752 = vmatpush.msra.mxu0 0.0
        %753 = vmatpush.msra.mxu0 0.0
        %754 = vmatpush.msra.mxu0 %v740
        %755 = vmatpush.msra.mxu0 %v731
        %756 = vmatpush.msra.mxu0 %v730
        %757 = vmatpush.msra.mxu0 %v729
        %758 = vmatmul.f32.gmra.mxu0 %v737
        %v759 = vpop.f32.mrf.mxu0
        %v760 = vadd.f32 0.0, %v759
        %761 = vdwg.mxu0
        %762 = vrot.lane.b32.xlu0 %v716, 124
        %v763 = vpop.permute.xlu0 %762
        %v764 = vsel %vm736, %v763, 0
        %766 = vmatpush.msra.mxu0 0.0
        %767 = vmatpush.msra.mxu0 0.0
        %768 = vmatpush.msra.mxu0 0.0
        %769 = vmatpush.msra.mxu0 0.0
        %770 = vmatpush.msra.mxu0 0.0
        %771 = vmatpush.msra.mxu0 0.0
        %772 = vmatpush.msra.mxu0 0.0
        %773 = vmatpush.msra.mxu0 0.0
        %774 = vmatpush.msra.mxu0 0.0
        %775 = vmatpush.msra.mxu0 0.0
        %776 = vmatpush.msra.mxu0 0.0
        %777 = vmatpush.msra.mxu0 0.0
        %778 = vmatpush.msra.mxu0 %v740
        %779 = vmatpush.msra.mxu0 %v731
        %780 = vmatpush.msra.mxu0 %v730
        %781 = vmatpush.msra.mxu0 %v729
        %782 = vmatmul.f32.gmra.mxu0 %v764
        %v783 = vpop.f32.mrf.mxu0
        %v784 = vadd.f32 0.0, %v783
        %785 = vdwg.mxu0
        %786 = vrot.lane.b32.xlu0 %v716, 27
        %v787 = vpop.permute.xlu0 %786
        %v789 = vsel %vm736, %v760, %v787
        %790 = vrot.lane.b32.xlu0 %v716, 101
        %v791 = vpop.permute.xlu0 %790
        %794 = vrot.lane.b32.xlu0 %v784, 5
        %v795 = vpop.permute.xlu0 %794
        %vm797 = vcmask 39936
        %v798 = vsel %vm797, %v791, %v795
        %s799 = scalar_lea.vmem %s1, 48
        %v800 = vld [vmem:[%s799] sm:$0xff]
        %v801 = vld [vmem:[%s799 + $0x8] sm:$0xff]
        %s802 = scalar_lea.vmem %s2, 48
        %v803 = vld [vmem:[%s802] sm:$0xff]
        %v804 = vld [vmem:[%s802 + $0x8] sm:$0xff]
        %806 = vset.pattern.permute.xlu0 0
        %807 = vperm.xlu0 %806, %v803
        %v808 = vpop.permute.xlu0 %807
        %811 = vset.pattern.permute.xlu0 0
        %812 = vperm.xlu0 %811, %v804
        %v813 = vpop.permute.xlu0 %812
        %v816 = vsel %vm271, %v800, 0
        %v819 = vsel %vm271, %v801, 0
        %821 = vmatpush.msra.mxu0 0.0
        %822 = vmatpush.msra.mxu0 0.0
        %823 = vmatpush.msra.mxu0 0.0
        %824 = vmatpush.msra.mxu0 0.0
        %825 = vmatpush.msra.mxu0 0.0
        %826 = vmatpush.msra.mxu0 0.0
        %827 = vmatpush.msra.mxu0 0.0
        %828 = vmatpush.msra.mxu0 0.0
        %829 = vmatpush.msra.mxu0 0.0
        %830 = vmatpush.msra.mxu0 0.0
        %831 = vmatpush.msra.mxu0 0.0
        %832 = vmatpush.msra.mxu0 0.0
        %833 = vmatpush.msra.mxu0 0.0
        %834 = vmatpush.msra.mxu0 %v798
        %835 = vmatpush.msra.mxu0 %v716
        %836 = vmatpush.msra.mxu0 %v789
        %837 = vmatmul.f32.gmra.mxu0 %v816
        %v838 = vpop.f32.mrf.mxu0
        %v839 = vadd.f32 %v808, %v838
        %840 = vmatmul.f32.gmra.mxu0 %v819
        %v841 = vpop.f32.mrf.mxu0
        %v842 = vadd.f32 %v813, %v841
        %843 = vdwg.mxu0
        %v844 = vtanh.pop %v839
        %v845 = vxor.u32 %v842, 2147483648
        %v846 = vmul.f32 %v845, 1.442695
        %v847 = vpow.pop %v846
        %v848 = vadd.f32 %v847, 1.0
        %v849 = vrcp.pop %v848
        %v850 = vmul.f32 %v848, %v849
        %v851 = vsub.f32 1.0, %v850
        %v852 = vmul.f32 %v849, %v851
        %v853 = vadd.f32 %v849, %v852
        %vm854 = vweird.f32 %v848
        %vm855 = vweird.f32 %v849
        %vm856 = vmor %vm854, %vm855
        %v857 = vsel %vm856, %v849, %v853
        %v858 = vand.u32 2147483647, %v848
        %vm859 = vcmp.eq.f32.partialorder %v858, 8.507059e+37
        %v860 = vand.u32 %v848, 2147483648
        %v861 = vor.u32 1.1754944e-38, %v860
        %v862 = vsel %vm859, %v861, %v857
        %v863 = vmul.f32 1.0, %v862
        %v864 = vmul.f32 %v844, %v863
        %vm865 = vcmp.ge.f32.partialorder %v864, 0.0
        %v866 = vmul.f32 %v864, 0.2
        %v867 = vsel %vm865, %v864, %v866
        %s868 = scalar_lea.vmem %s3, 24
        %v869 = vld [vmem:[%s868] sm:$0xff]
        %s870 = scalar_lea.vmem %s4, 24
        %v871 = vld [vmem:[%s870] sm:$0xff]
        %873 = vset.pattern.permute.xlu0 0
        %874 = vperm.xlu0 %873, %v871
        %v875 = vpop.permute.xlu0 %874
        %v878 = vsel %vm332, %v869, 0
        %880 = vmatpush.msra.mxu0 0.0
        %881 = vmatpush.msra.mxu0 0.0
        %882 = vmatpush.msra.mxu0 0.0
        %883 = vmatpush.msra.mxu0 0.0
        %884 = vmatpush.msra.mxu0 0.0
        %885 = vmatpush.msra.mxu0 0.0
        %886 = vmatpush.msra.mxu0 0.0
        %887 = vmatpush.msra.mxu0 0.0
        %888 = vmatpush.msra.mxu0 0.0
        %889 = vmatpush.msra.mxu0 0.0
        %890 = vmatpush.msra.mxu0 0.0
        %891 = vmatpush.msra.mxu0 0.0
        %892 = vmatpush.msra.mxu0 0.0
        %893 = vmatpush.msra.mxu0 0.0
        %894 = vmatpush.msra.mxu0 %v867
        %895 = vmatpush.msra.mxu0 %v712
        %896 = vmatmul.f32.gmra.mxu0 %v878
        %v897 = vpop.f32.mrf.mxu0
        %v898 = vadd.f32 %v875, %v897
        %899 = vdwg.mxu0
        %vm900 = vcmask 261120
        %901 = vst.msk [vmem:[%s241] sm:$0xff] %vm900, %v898
        %s902 = sand.u32 %s140, 1
        %s903 = scalar_lea.sflag [#allocation4], %s902
        %s904 = sand.u32 %s140, 1
        %s905 = smul.addr %s904, 8
        %s906 = scalar_lea.vmem [#allocation5], %s905
        // Predicated region
        $region45: #{tpu_custom_call.1} parent=39 // pred_check
          %p907 = pneg %p150
        $region46: #{tpu_custom_call.1} parent=39 // pred_check_branch
          %909 = sbr.rel (%p907) target = $region48
        $region47: #{tpu_custom_call.1} parent=39 // pred_region
          %911 = vsyncadd %s903, 0
          %s912 = smul.addr %s22, 8
          %s913 = scalar_lea.hbm %s5, %s912
          %s915 = sshll.u32 %s906, 4
          %s916 = int_to_ptr.vmem [resolvable:$true] %s915
          %s917 = sshll.u32 %s913, 4
          %s918 = int_to_ptr.hbm [resolvable:$true] %s917
          %920 = dma.vmem_to_hbm [thread:$0]  %s916, 128, %s918, %s903
        $region48: #{tpu_custom_call.1} parent=39 // pred_fallthru
          _
      $region40: #{tpu_custom_call.1} parent=5 // pred_fallthru
        _
      %p921 = scmp.le.s32.totalorder 2, %s17
      // Predicated region
      $region49: #{tpu_custom_call.1} parent=5 // pred_check
        %p922 = pneg %p921
      $region50: #{tpu_custom_call.1} parent=5 // pred_check_branch
        %924 = sbr.rel (%p922) target = $region52
      $region51: #{tpu_custom_call.1} parent=5 // pred_region
        %s925 = ssub.s32 %s17, 2
        // Predicated region
        $region53: #{tpu_custom_call.1} parent=51 // pred_check
          %p926 = pneg %p156
        $region54: #{tpu_custom_call.1} parent=51 // pred_check_branch
          %928 = sbr.rel (%p926) target = $region56
        $region55: #{tpu_custom_call.1} parent=51 // pred_region
          %s929 = sand.u32 %s141, 1
          %s930 = scalar_lea.sflag [#allocation4], %s929
          %s931 = sand.u32 %s141, 1
          %s932 = smul.addr %s931, 8
          %s933 = scalar_lea.vmem [#allocation5], %s932
          %935 = dma.done %s930, 128
        $region56: #{tpu_custom_call.1} parent=51 // pred_fallthru
          _
      $region52: #{tpu_custom_call.1} parent=5 // pred_fallthru
        _
    $region6: #{tpu_custom_call.1} parent=1 // loop_footer
      %s21 = sadd.s32 1, %s17
    $region7: #{tpu_custom_call.1} parent=1 // loop_footer_branch
      %16 = sbr.rel target = $region3
    $region8: #{tpu_custom_call.1} parent=1 // loop_exit
      _
    %936 = vsyncpa [#allocation3], 1
    %s937 = scalar_lea.sflag [#allocation3], 1
    %938 = vsyncpa %s937, 1
    %939 = vsyncpa [#allocation4], 1
    %s940 = scalar_lea.sflag [#allocation4], 1
    %941 = vsyncpa %s940, 1

</llo_original>
